<compile_context>
chip_gen: v5e
topology: v5e:2x2
jax: 0.10.0
libtpu: 0.0.40
codegen_flags: <defaults>
</compile_context>

<pallas_src>
import functools

import jax
import jax.numpy as jnp
from jax import lax
from jax.experimental import pallas as pl
from jax.experimental.pallas import tpu as pltpu

EPS = 1e-5


def _pick_l_tile(l_out):
    """Largest lane tile (multiple of 128, <= 2048) that divides L_out.

    Falls back to the full L_out for small / awkward lengths (block dim equal
    to the full array dim is always legal). Keeps per-step VMEM well under the
    v7x 64 MiB budget for realistic TDNN channel counts.
    """
    for t in (2048, 1024, 512, 256, 128):
        if l_out % t == 0:
            return t
    return l_out


def conv_relu_stats_kernel(x_ref, w_ref, b_ref, y_ref, sum_ref, ssq_ref,
                           xcat_ref, *, kernel_size, dilation, l_tile, num_l):
    """One (batch n, L tile l) grid step.

    x_ref:   (1, C_in_p, L_pad)   full padded length for batch n (re-used
                                  across the inner l axis -> one DMA per n).
    w_ref:   (C_out, K*C_in_p)    im2col-folded weights (tap-major columns).
    b_ref:   (C_out, 1)           conv bias.
    y_ref:   (1, C_out, TL)       conv + bias + ReLU output tile.
    sum_ref: (1, 1, C_out, 1)     per-tile channel sums      (for BatchNorm).
    ssq_ref: (1, 1, C_out, 1)     per-tile channel sum-of-sq (for BatchNorm).
    xcat_ref:(K*C_in_p, TL)       VMEM scratch for the im2col operand.
    """
    c_in_p = x_ref.shape[1]

    if num_l == 1:
        off = 0                                   # fully static slicing path
    else:
        off = pl.multiple_of(pl.program_id(1) * l_tile, l_tile)

    # Build the im2col operand once per tile: stack the K dilated taps along
    # the contraction (sublane) axis. C_in_p is a multiple of 8, so every
    # destination slice is sublane-aligned.
    for k in range(kernel_size):
        xcat_ref[k * c_in_p:(k + 1) * c_in_p, :] = (
            x_ref[0, :, pl.ds(off + k * dilation, l_tile)])

    # Single MXU matmul, contraction dim K*C_in (instead of K tiny dots).
    y = jnp.dot(w_ref[...], xcat_ref[...], preferred_element_type=jnp.float32)
    y = jnp.maximum(y + b_ref[...], 0.0)          # conv bias + ReLU

    y_ref[0] = y.astype(y_ref.dtype)
    # Tiny per-tile partial statistics (reduced over the lane axis); the
    # (N, num_l, C_out, 1) partials are reduced to scalars-per-channel in the
    # wrapper. Keeping them per-tile avoids serializing the grid.
    sum_ref[0, 0] = jnp.sum(y, axis=1, keepdims=True)
    ssq_ref[0, 0] = jnp.sum(y * y, axis=1, keepdims=True)


def bn_affine_kernel(y_ref, scale_ref, shift_ref, o_ref):
    """o = y * scale + shift  (BatchNorm folded into a per-channel affine)."""
    o_ref[0] = (y_ref[0].astype(jnp.float32) * scale_ref[...]
                + shift_ref[...]).astype(o_ref.dtype)


def tdnn_block_forward(x, weight, bias, gamma, beta, *, stride=1, padding=0,
                       dilation=1, groups=1, compute_dtype=jnp.float32):
    """x: (N, C_in, L); weight: (C_out, C_in, K); bias/gamma/beta: (C_out,).

    compute_dtype: set to jnp.bfloat16 to halve activation/weight HBM traffic
    and double MXU throughput on v6e/v7x (f32 accumulation is kept either way);
    default f32 preserves tight agreement with the f32 reference.
    """
    # TODO(synk): stride > 1 and groups > 1 are not implemented in the kernel.
    assert stride == 1 and groups == 1
    N, C_in, L = x.shape
    C_out, _, K = weight.shape

    # Pad C_in up to a multiple of 8 (sublane-aligned im2col staging; the zero
    # channels contribute nothing) and apply the conv zero padding.
    # TODO(synk): the L zero-padding is still materialized by jnp.pad in HBM;
    # it could be folded into the kernel by masking the first/last L tiles.
    C_in_p = ((C_in + 7) // 8) * 8
    x_pad = jnp.pad(x, ((0, 0), (0, C_in_p - C_in), (padding, padding)))
    Lp = L + 2 * padding
    L_out = (Lp - dilation * (K - 1) - 1) // stride + 1

    TL = _pick_l_tile(L_out)
    num_l = L_out // TL

    # Fold the K taps into the contraction dim (columns ordered tap-major,
    # input-channel minor) so the kernel does one matmul per tile.
    w_p = jnp.pad(weight, ((0, 0), (0, C_in_p - C_in), (0, 0)))
    w2 = jnp.transpose(w_p, (0, 2, 1)).reshape(C_out, K * C_in_p)
    b2 = bias.reshape(C_out, 1).astype(jnp.float32)

    x_pad = x_pad.astype(compute_dtype)
    w2 = w2.astype(compute_dtype)

    kern = functools.partial(conv_relu_stats_kernel, kernel_size=K,
                             dilation=dilation, l_tile=TL, num_l=num_l)

    y, psum, pssq = pl.pallas_call(
        kern,
        out_shape=(
            jax.ShapeDtypeStruct((N, C_out, L_out), jnp.float32),
            jax.ShapeDtypeStruct((N, num_l, C_out, 1), jnp.float32),
            jax.ShapeDtypeStruct((N, num_l, C_out, 1), jnp.float32),
        ),
        grid=(N, num_l),
        in_specs=[
            pl.BlockSpec((1, C_in_p, Lp), lambda n, l: (n, 0, 0)),
            pl.BlockSpec((C_out, K * C_in_p), lambda n, l: (0, 0)),
            pl.BlockSpec((C_out, 1), lambda n, l: (0, 0)),
        ],
        out_specs=(
            pl.BlockSpec((1, C_out, TL), lambda n, l: (n, 0, l)),
            pl.BlockSpec((1, 1, C_out, 1), lambda n, l: (n, l, 0, 0)),
            pl.BlockSpec((1, 1, C_out, 1), lambda n, l: (n, l, 0, 0)),
        ),
        scratch_shapes=[pltpu.VMEM((K * C_in_p, TL), compute_dtype)],
        compiler_params=pltpu.CompilerParams(
            dimension_semantics=("parallel", "arbitrary")),
    )(x_pad, w2, b2)

    # Finalize batch statistics (training-mode, biased variance) -- this is a
    # tiny O(C_out) computation -- and fold BatchNorm into y*scale + shift.
    cnt = jnp.float32(N * L_out)
    s = jnp.sum(psum, axis=(0, 1))                      # (C_out, 1)
    ss = jnp.sum(pssq, axis=(0, 1))                     # (C_out, 1)
    mean = s / cnt
    var = jnp.maximum(ss / cnt - mean * mean, 0.0)
    inv = lax.rsqrt(var + EPS)
    scale = gamma.reshape(C_out, 1).astype(jnp.float32) * inv
    shift = beta.reshape(C_out, 1).astype(jnp.float32) - mean * scale

    out = pl.pallas_call(
        bn_affine_kernel,
        out_shape=jax.ShapeDtypeStruct((N, C_out, L_out), x.dtype),
        grid=(N, num_l),
        in_specs=[
            pl.BlockSpec((1, C_out, TL), lambda n, l: (n, 0, l)),
            pl.BlockSpec((C_out, 1), lambda n, l: (0, 0)),
            pl.BlockSpec((C_out, 1), lambda n, l: (0, 0)),
        ],
        out_specs=pl.BlockSpec((1, C_out, TL), lambda n, l: (n, 0, l)),
        compiler_params=pltpu.CompilerParams(
            dimension_semantics=("parallel", "arbitrary")),
    )(y, scale, shift)
    return out


def _reference(x, weight, bias, gamma, beta, *, padding, dilation):
    """Pure-JAX reference of the PyTorch forward (training-mode batchnorm)."""
    y = lax.conv_general_dilated(
        x, weight, window_strides=(1,), padding=[(padding, padding)],
        rhs_dilation=(dilation,), dimension_numbers=('NCH', 'OIH', 'NCH'))
    y = y + bias[None, :, None]
    y = jnp.maximum(y, 0.0)
    mean = jnp.mean(y, axis=(0, 2), keepdims=True)
    var = jnp.mean((y - mean) ** 2, axis=(0, 2), keepdims=True)
    return (y - mean) / jnp.sqrt(var + EPS) * gamma[None, :, None] + beta[None, :, None]


if __name__ == "__main__":
    # Small shapes consistent with the module: Conv1d(in=4, out=8, k=3, pad=1)
    N, C_in, C_out, K, L, PAD, DIL = 2, 4, 8, 3, 16, 1, 1

    key = jax.random.PRNGKey(0)
    kx, kw, kb, kg, kbeta = jax.random.split(key, 5)

    x = jax.random.normal(kx, (N, C_in, L), dtype=jnp.float32)
    # Deterministic synthetic parameters (PyTorch-style uniform fan-in init).
    bound = 1.0 / (C_in * K) ** 0.5
    weight = jax.random.uniform(kw, (C_out, C_in, K), jnp.float32, -bound, bound)
    bias = jax.random.uniform(kb, (C_out,), jnp.float32, -bound, bound)
    gamma = 1.0 + 0.1 * jax.random.normal(kg, (C_out,), jnp.float32)
    beta = 0.1 * jax.random.normal(kbeta, (C_out,), jnp.float32)

    out = tdnn_block_forward(x, weight, bias, gamma, beta,
                             stride=1, padding=PAD, dilation=DIL)
    out = jax.block_until_ready(out)

    ref = _reference(x, weight, bias, gamma, beta, padding=PAD, dilation=DIL)
    assert out.shape == ref.shape
    assert jnp.allclose(out, ref, rtol=2e-3, atol=2e-3), "mismatch vs JAX reference"

    print("KERNEL_OK")
</pallas_src>

<mosaic_0001>
module attributes {stable_mosaic.version = 11 : i64} {
  func.func @conv_relu_stats_kernel(%arg0: i32, %arg1: i32, %arg2: memref<1x8x18xf32, #tpu.memory_space<vmem>>, %arg3: memref<8x24xf32, #tpu.memory_space<vmem>>, %arg4: memref<8x1xf32, #tpu.memory_space<vmem>>, %arg5: memref<1x8x16xf32, #tpu.memory_space<vmem>>, %arg6: memref<1x1x8x1xf32, #tpu.memory_space<vmem>>, %arg7: memref<1x1x8x1xf32, #tpu.memory_space<vmem>>, %arg8: memref<24x16xf32, #tpu.memory_space<vmem>>) attributes {dimension_semantics = [#tpu.dimension_semantics<parallel>, #tpu.dimension_semantics<arbitrary>], iteration_bounds = array<i64: 2, 1>, scalar_prefetch = 0 : i64, scratch_operands = 1 : i64, tpu.core_type = #tpu.core_type<tc>, window_params = [{transform_indices = @transform_0, window_bounds = array<i64: 1, 8, 18>}, {pipeline_mode = #tpu.pipeline_mode<synchronous>, transform_indices = @transform_1, window_bounds = array<i64: 8, 24>}, {pipeline_mode = #tpu.pipeline_mode<synchronous>, transform_indices = @transform_2, window_bounds = array<i64: 8, 1>}, {transform_indices = @transform_3, window_bounds = array<i64: 1, 8, 16>}, {transform_indices = @transform_4, window_bounds = array<i64: 1, 1, 8, 1>}, {transform_indices = @transform_5, window_bounds = array<i64: 1, 1, 8, 1>}]} {
    %c0 = arith.constant 0 : index
    %c0_0 = arith.constant 0 : index
    %c0_1 = arith.constant 0 : index
    %0 = vector.load %arg2[%c0, %c0_0, %c0_1] : memref<1x8x18xf32, #tpu.memory_space<vmem>>, vector<1x8x16xf32>
    %1 = vector.shape_cast %0 : vector<1x8x16xf32> to vector<8x16xf32>
    %c0_2 = arith.constant 0 : index
    %c0_3 = arith.constant 0 : index
    %2 = vector.load %arg8[%c0_2, %c0_3] : memref<24x16xf32, #tpu.memory_space<vmem>>, vector<8x16xf32>
    tpu.vector_store %arg8[%c0_2, %c0_3], %1 {strides = array<i32>} : memref<24x16xf32, #tpu.memory_space<vmem>>, vector<8x16xf32>,
    %c0_4 = arith.constant 0 : index
    %c0_5 = arith.constant 0 : index
    %c1 = arith.constant 1 : index
    %3 = vector.load %arg2[%c0_4, %c0_5, %c1] : memref<1x8x18xf32, #tpu.memory_space<vmem>>, vector<1x8x16xf32>
    %4 = vector.shape_cast %3 : vector<1x8x16xf32> to vector<8x16xf32>
    %c8 = arith.constant 8 : index
    %c0_6 = arith.constant 0 : index
    %5 = vector.load %arg8[%c8, %c0_6] : memref<24x16xf32, #tpu.memory_space<vmem>>, vector<8x16xf32>
    tpu.vector_store %arg8[%c8, %c0_6], %4 {strides = array<i32>} : memref<24x16xf32, #tpu.memory_space<vmem>>, vector<8x16xf32>,
    %c0_7 = arith.constant 0 : index
    %c0_8 = arith.constant 0 : index
    %c2 = arith.constant 2 : index
    %6 = vector.load %arg2[%c0_7, %c0_8, %c2] : memref<1x8x18xf32, #tpu.memory_space<vmem>>, vector<1x8x16xf32>
    %7 = vector.shape_cast %6 : vector<1x8x16xf32> to vector<8x16xf32>
    %c16 = arith.constant 16 : index
    %c0_9 = arith.constant 0 : index
    %8 = vector.load %arg8[%c16, %c0_9] : memref<24x16xf32, #tpu.memory_space<vmem>>, vector<8x16xf32>
    tpu.vector_store %arg8[%c16, %c0_9], %7 {strides = array<i32>} : memref<24x16xf32, #tpu.memory_space<vmem>>, vector<8x16xf32>,
    %c0_10 = arith.constant 0 : index
    %c0_11 = arith.constant 0 : index
    %9 = vector.load %arg3[%c0_10, %c0_11] : memref<8x24xf32, #tpu.memory_space<vmem>>, vector<8x24xf32>
    %c0_12 = arith.constant 0 : index
    %c0_13 = arith.constant 0 : index
    %10 = vector.load %arg8[%c0_12, %c0_13] : memref<24x16xf32, #tpu.memory_space<vmem>>, vector<24x16xf32>
    %cst = arith.constant dense<0.000000e+00> : vector<8x16xf32>
    %11 = tpu.matmul %9, %10, %cst {dimension_numbers = #tpu.dot_dimension_numbers<[1], [0], [0], [1], [0, 0, 1, 1], [], []>} : vector<8x24xf32>, vector<24x16xf32>, vector<8x16xf32> -> vector<8x16xf32>
    %c0_14 = arith.constant 0 : index
    %c0_15 = arith.constant 0 : index
    %12 = vector.load %arg4[%c0_14, %c0_15] : memref<8x1xf32, #tpu.memory_space<vmem>>, vector<8x1xf32>
    %13 = vector.broadcast %12 : vector<8x1xf32> to vector<8x16xf32>
    %14 = arith.addf %11, %13 : vector<8x16xf32>
    %cst_16 = arith.constant 0.000000e+00 : f32
    %15 = vector.broadcast %cst_16 : f32 to vector<8x16xf32>
    %16 = arith.maximumf %14, %15 : vector<8x16xf32>
    %c0_17 = arith.constant 0 : index
    %c0_18 = arith.constant 0 : index
    %c0_19 = arith.constant 0 : index
    %17 = vector.load %arg5[%c0_17, %c0_18, %c0_19] : memref<1x8x16xf32, #tpu.memory_space<vmem>>, vector<1x8x16xf32>
    %18 = vector.shape_cast %17 : vector<1x8x16xf32> to vector<8x16xf32>
    %19 = vector.shape_cast %16 : vector<8x16xf32> to vector<1x8x16xf32>
    tpu.vector_store %arg5[%c0_17, %c0_18, %c0_19], %19 {strides = array<i32>} : memref<1x8x16xf32, #tpu.memory_space<vmem>>, vector<1x8x16xf32>,
    %cst_20 = arith.constant dense<0.000000e+00> : vector<8xf32>
    %20 = vector.multi_reduction <add>, %16, %cst_20 [1] : vector<8x16xf32> to vector<8xf32>
    %21 = vector.shape_cast %20 : vector<8xf32> to vector<8x1xf32>
    %c0_21 = arith.constant 0 : index
    %c0_22 = arith.constant 0 : index
    %c0_23 = arith.constant 0 : index
    %c0_24 = arith.constant 0 : index
    %22 = vector.load %arg6[%c0_21, %c0_22, %c0_23, %c0_24] : memref<1x1x8x1xf32, #tpu.memory_space<vmem>>, vector<1x1x8x1xf32>
    %23 = vector.shape_cast %22 : vector<1x1x8x1xf32> to vector<8x1xf32>
    %24 = vector.shape_cast %21 : vector<8x1xf32> to vector<1x1x8x1xf32>
    tpu.vector_store %arg6[%c0_21, %c0_22, %c0_23, %c0_24], %24 {strides = array<i32>} : memref<1x1x8x1xf32, #tpu.memory_space<vmem>>, vector<1x1x8x1xf32>,
    %25 = arith.mulf %16, %16 : vector<8x16xf32>
    %cst_25 = arith.constant dense<0.000000e+00> : vector<8xf32>
    %26 = vector.multi_reduction <add>, %25, %cst_25 [1] : vector<8x16xf32> to vector<8xf32>
    %27 = vector.shape_cast %26 : vector<8xf32> to vector<8x1xf32>
    %c0_26 = arith.constant 0 : index
    %c0_27 = arith.constant 0 : index
    %c0_28 = arith.constant 0 : index
    %c0_29 = arith.constant 0 : index
    %28 = vector.load %arg7[%c0_26, %c0_27, %c0_28, %c0_29] : memref<1x1x8x1xf32, #tpu.memory_space<vmem>>, vector<1x1x8x1xf32>
    %29 = vector.shape_cast %28 : vector<1x1x8x1xf32> to vector<8x1xf32>
    %30 = vector.shape_cast %27 : vector<8x1xf32> to vector<1x1x8x1xf32>
    tpu.vector_store %arg7[%c0_26, %c0_27, %c0_28, %c0_29], %30 {strides = array<i32>} : memref<1x1x8x1xf32, #tpu.memory_space<vmem>>, vector<1x1x8x1xf32>,
    return
  }
  func.func @transform_0(%arg0: i32, %arg1: i32) -> (i32, i32, i32) {
    %c0_i32 = arith.constant 0 : i32
    %c0_i32_0 = arith.constant 0 : i32
    %c0_i32_1 = arith.constant 0 : i32
    return %arg0, %c0_i32, %c0_i32_0 : i32, i32, i32
  }
  func.func @transform_1(%arg0: i32, %arg1: i32) -> (i32, i32) {
    %c0_i32 = arith.constant 0 : i32
    %c0_i32_0 = arith.constant 0 : i32
    %c0_i32_1 = arith.constant 0 : i32
    return %c0_i32, %c0_i32_0 : i32, i32
  }
  func.func @transform_2(%arg0: i32, %arg1: i32) -> (i32, i32) {
    %c0_i32 = arith.constant 0 : i32
    %c0_i32_0 = arith.constant 0 : i32
    %c0_i32_1 = arith.constant 0 : i32
    return %c0_i32, %c0_i32_0 : i32, i32
  }
  func.func @transform_3(%arg0: i32, %arg1: i32) -> (i32, i32, i32) {
    %c0_i32 = arith.constant 0 : i32
    %c0_i32_0 = arith.constant 0 : i32
    return %arg0, %c0_i32, %arg1 : i32, i32, i32
  }
  func.func @transform_4(%arg0: i32, %arg1: i32) -> (i32, i32, i32, i32) {
    %c0_i32 = arith.constant 0 : i32
    %c0_i32_0 = arith.constant 0 : i32
    %c0_i32_1 = arith.constant 0 : i32
    return %arg0, %arg1, %c0_i32, %c0_i32_0 : i32, i32, i32, i32
  }
  func.func @transform_5(%arg0: i32, %arg1: i32) -> (i32, i32, i32, i32) {
    %c0_i32 = arith.constant 0 : i32
    %c0_i32_0 = arith.constant 0 : i32
    %c0_i32_1 = arith.constant 0 : i32
    return %arg0, %arg1, %c0_i32, %c0_i32_0 : i32, i32, i32, i32
  }
}

</mosaic_0001>

<llo_original>
// kernel: tpu_custom_call.1
$region0: #{tpu_custom_call.1}
  #allocation0 [shape = 'u32[]', space=smem, size = 0x4, offset = 0x4, fixed_abs, tag = 'smem constant byte address 0x4 - core index']
  #allocation1 [shape = 'u32[72,128]{1,0:T(1,128)}', space=vmem, size = 0x9000, scoped, tag = 'internal scratch']
  #allocation2 [shape = 'f32[24,16]{1,0:T(8,128)}', space=vmem, size = 0x3000, scoped, tag = 'scratch operand']
  %s0 = inlined_call_operand.hbm [shape: f32[2,8,18], index: 0, kind: input, shape index: {}]
  %s1 = inlined_call_operand.vmem [shape: f32[8,24], index: 1, kind: input, shape index: {}]
  %s2 = inlined_call_operand.vmem [shape: f32[8,1], index: 2, kind: input, shape index: {}]
  %s3 = inlined_call_operand.hbm [shape: f32[2,8,16], index: 3, kind: output, shape index: {0}]
  %s4 = inlined_call_operand.vmem [shape: f32[2,1,8,1], index: 4, kind: output, shape index: {1}]
  %s5 = inlined_call_operand.vmem [shape: f32[2,1,8,1], index: 5, kind: output, shape index: {2}]
  %6 = xla_tuple %s3, %s4, %s5
  %s7 = sld [smem:[#allocation0]]
  $region65: #{tpu_custom_call.1} parent=0
    _
  %s9 = ssub.s32 1, %s7
  %s10 = scalar_select 0, %s9, %s7
  $region1: #{tpu_custom_call.1} parent=0
    #allocation3 [shape = 'u8[8192]{0}', space=vmem, size = 0x2000, scoped, tag = 'input window, operand 0']
    #allocation4 [shape = 's32[2]{0}', space=sflag, size = 0x8, scoped, tag = 'scoped memory for tpu_custom_call.1']
    #allocation5 [shape = 's32[2]{0}', space=sflag, size = 0x8, scoped, tag = 'scoped memory for tpu_custom_call.1']
    #allocation6 [shape = 'u8[8192]{0}', space=vmem, size = 0x2000, scoped, tag = 'output window, operand 0']
    %11 = vsyncpa [#allocation4], 0
    %s12 = scalar_lea.sflag [#allocation4], 1
    %13 = vsyncpa %s12, 0
    %14 = vsyncpa [#allocation5], 0
    %s15 = scalar_lea.sflag [#allocation5], 1
    %16 = vsyncpa %s15, 0
    loop: start=0, step=1, limit=4
    $region2: #{tpu_custom_call.1} parent=1 // loop_pre_header
      _
    $region3: #{tpu_custom_call.1} parent=1 // loop_header
      %s18 = sphi 0, %s22
      %p19 = scmp.ge.s32.totalorder %s18, 4
      %s25 = sphi 0, %s37
      %s26 = sphi 0, %s33
      %s27 = sphi 0, %s25
      %s28 = sphi 0, %s26
      %s29 = sphi 0, %s27
      %s30 = sphi 0, %s28
      %s40 = sphi 0, %s42
      %s43 = sphi 0, %s40
      %s44 = sphi 0, %s43
      %s60 = sphi 0, %s44
      %s64 = sphi 0, %s64
      %s66 = sphi 0, %s64
      %s67 = sphi 0, %s66
      %s81 = sphi 0, %s67
      %s85 = sphi 0, %s85
      %s87 = sphi 0, %s85
      %s88 = sphi 0, %s87
      %s102 = sphi 0, %s88
      %s110 = sphi 0, %s112
      %s113 = sphi 0, %s110
      %s114 = sphi 0, %s113
      %s130 = sphi 0, %s114
      %s138 = sphi 0, %s140
      %s141 = sphi 0, %s138
      %s142 = sphi 0, %s141
      %s158 = sphi 0, %s142
      %s166 = sphi 0, %s168
      %s169 = sphi 0, %s166
      %s170 = sphi 0, %s169
      %s186 = sphi 0, %s170
    $region4: #{tpu_custom_call.1} parent=1 // loop_header_branch
      %21 = sbr.rel (%p19) target = $region8
    $region5: #{tpu_custom_call.1} parent=1 // loop_body
      %s23 = ssub.s32 %s18, 1
      %s24 = ssub.s32 %s18, 2
      %s31 = sadd.s32 1, %s26
      %p32 = scmp.ge.s32.totalorder %s31, 1
      %s33 = scalar_select %p32, 0, %s31
      %s34 = sadd.s32 1, %s25
      %s35 = scalar_select %p32, %s34, %s25
      %p36 = scmp.ge.s32.totalorder %s35, 2
      %s37 = scalar_select %p36, 0, %s35
      %s38 = ssub.s32 %s25, %s37
      %p39 = scmp.eq.s32.totalorder %s38, 0
      %s41 = sadd.s32 %s40, 1
      %s42 = scalar_select %p39, %s40, %s41
      %p45 = pneg %p39
      %p46 = scmp.eq.s32.totalorder %s18, 1
      %p47 = por %p45, %p46
      %p48 = scmp.ne.s32.totalorder %s40, %s43
      %p49 = scmp.eq.s32.totalorder %s18, 0
      %p50 = por %p48, %p49
      %p51 = scmp.ne.s32.totalorder %s40, %s43
      %p52 = scmp.eq.s32.totalorder %s23, 1
      %p53 = por %p51, %p52
      %p54 = scmp.ne.s32.totalorder %s43, %s44
      %p55 = scmp.eq.s32.totalorder %s23, 0
      %p56 = por %p54, %p55
      %p57 = scmp.ne.s32.totalorder %s43, %s44
      %p58 = scmp.eq.s32.totalorder %s24, 1
      %p59 = por %p57, %p58
      %p61 = scmp.ne.s32.totalorder %s44, %s60
      %p62 = scmp.eq.s32.totalorder %s24, 0
      %p63 = por %p61, %p62
      %s65 = sadd.s32 %s64, 1
      %p68 = scmp.eq.s32.totalorder %s18, 1
      %p69 = scmp.ne.s32.totalorder %s64, %s66
      %p70 = scmp.eq.s32.totalorder %s18, 0
      %p71 = por %p69, %p70
      %p72 = scmp.ne.s32.totalorder %s64, %s66
      %p73 = scmp.eq.s32.totalorder %s23, 1
      %p74 = por %p72, %p73
      %p75 = scmp.ne.s32.totalorder %s66, %s67
      %p76 = scmp.eq.s32.totalorder %s23, 0
      %p77 = por %p75, %p76
      %p78 = scmp.ne.s32.totalorder %s66, %s67
      %p79 = scmp.eq.s32.totalorder %s24, 1
      %p80 = por %p78, %p79
      %p82 = scmp.ne.s32.totalorder %s67, %s81
      %p83 = scmp.eq.s32.totalorder %s24, 0
      %p84 = por %p82, %p83
      %s86 = sadd.s32 %s85, 1
      %p89 = scmp.eq.s32.totalorder %s18, 1
      %p90 = scmp.ne.s32.totalorder %s85, %s87
      %p91 = scmp.eq.s32.totalorder %s18, 0
      %p92 = por %p90, %p91
      %p93 = scmp.ne.s32.totalorder %s85, %s87
      %p94 = scmp.eq.s32.totalorder %s23, 1
      %p95 = por %p93, %p94
      %p96 = scmp.ne.s32.totalorder %s87, %s88
      %p97 = scmp.eq.s32.totalorder %s23, 0
      %p98 = por %p96, %p97
      %p99 = scmp.ne.s32.totalorder %s87, %s88
      %p100 = scmp.eq.s32.totalorder %s24, 1
      %p101 = por %p99, %p100
      %p103 = scmp.ne.s32.totalorder %s88, %s102
      %p104 = scmp.eq.s32.totalorder %s24, 0
      %p105 = por %p103, %p104
      %s106 = ssub.s32 %s25, %s37
      %s107 = ssub.s32 %s26, %s33
      %s108 = sor.u32 %s106, %s107
      %p109 = scmp.eq.s32.totalorder %s108, 0
      %s111 = sadd.s32 %s110, 1
      %s112 = scalar_select %p109, %s110, %s111
      %p115 = pneg %p109
      %p116 = scmp.eq.s32.totalorder %s18, 1
      %p117 = por %p115, %p116
      %p118 = scmp.ne.s32.totalorder %s110, %s113
      %p119 = scmp.eq.s32.totalorder %s18, 0
      %p120 = por %p118, %p119
      %p121 = scmp.ne.s32.totalorder %s110, %s113
      %p122 = scmp.eq.s32.totalorder %s23, 1
      %p123 = por %p121, %p122
      %p124 = scmp.ne.s32.totalorder %s113, %s114
      %p125 = scmp.eq.s32.totalorder %s23, 0
      %p126 = por %p124, %p125
      %p127 = scmp.ne.s32.totalorder %s113, %s114
      %p128 = scmp.eq.s32.totalorder %s24, 1
      %p129 = por %p127, %p128
      %p131 = scmp.ne.s32.totalorder %s114, %s130
      %p132 = scmp.eq.s32.totalorder %s24, 0
      %p133 = por %p131, %p132
      %s134 = ssub.s32 %s25, %s37
      %s135 = ssub.s32 %s26, %s33
      %s136 = sor.u32 %s134, %s135
      %p137 = scmp.eq.s32.totalorder %s136, 0
      %s139 = sadd.s32 %s138, 1
      %s140 = scalar_select %p137, %s138, %s139
      %p143 = pneg %p137
      %p144 = scmp.eq.s32.totalorder %s18, 1
      %p145 = por %p143, %p144
      %p146 = scmp.ne.s32.totalorder %s138, %s141
      %p147 = scmp.eq.s32.totalorder %s18, 0
      %p148 = por %p146, %p147
      %p149 = scmp.ne.s32.totalorder %s138, %s141
      %p150 = scmp.eq.s32.totalorder %s23, 1
      %p151 = por %p149, %p150
      %p152 = scmp.ne.s32.totalorder %s141, %s142
      %p153 = scmp.eq.s32.totalorder %s23, 0
      %p154 = por %p152, %p153
      %p155 = scmp.ne.s32.totalorder %s141, %s142
      %p156 = scmp.eq.s32.totalorder %s24, 1
      %p157 = por %p155, %p156
      %p159 = scmp.ne.s32.totalorder %s142, %s158
      %p160 = scmp.eq.s32.totalorder %s24, 0
      %p161 = por %p159, %p160
      %s162 = ssub.s32 %s25, %s37
      %s163 = ssub.s32 %s26, %s33
      %s164 = sor.u32 %s162, %s163
      %p165 = scmp.eq.s32.totalorder %s164, 0
      %s167 = sadd.s32 %s166, 1
      %s168 = scalar_select %p165, %s166, %s167
      %p171 = pneg %p165
      %p172 = scmp.eq.s32.totalorder %s18, 1
      %p173 = por %p171, %p172
      %p174 = scmp.ne.s32.totalorder %s166, %s169
      %p175 = scmp.eq.s32.totalorder %s18, 0
      %p176 = por %p174, %p175
      %p177 = scmp.ne.s32.totalorder %s166, %s169
      %p178 = scmp.eq.s32.totalorder %s23, 1
      %p179 = por %p177, %p178
      %p180 = scmp.ne.s32.totalorder %s169, %s170
      %p181 = scmp.eq.s32.totalorder %s23, 0
      %p182 = por %p180, %p181
      %p183 = scmp.ne.s32.totalorder %s169, %s170
      %p184 = scmp.eq.s32.totalorder %s24, 1
      %p185 = por %p183, %p184
      %p187 = scmp.ne.s32.totalorder %s170, %s186
      %p188 = scmp.eq.s32.totalorder %s24, 0
      %p189 = por %p187, %p188
      %p190 = scmp.le.s32.totalorder 1, %s18
      %p191 = scmp.lt.s32.totalorder %s18, 3
      %p192 = pnand %p190, %p191
      %p193 = pneg %p192
      // Predicated region
      $region9: #{tpu_custom_call.1} parent=5 // pred_check
        _
      $region10: #{tpu_custom_call.1} parent=5 // pred_check_branch
        %195 = sbr.rel (%p192) target = $region12
      $region11: #{tpu_custom_call.1} parent=5 // pred_region
        %s196 = ssub.s32 %s18, 1
        // Predicated region
        $region13: #{tpu_custom_call.1} parent=11 // pred_check
          %p197 = pneg %p77
        $region14: #{tpu_custom_call.1} parent=11 // pred_check_branch
          %199 = sbr.rel (%p197) target = $region16
        $region15: #{tpu_custom_call.1} parent=11 // pred_region
          _
        $region16: #{tpu_custom_call.1} parent=11 // pred_fallthru
          _
        // Predicated region
        $region17: #{tpu_custom_call.1} parent=11 // pred_check
          %p200 = pneg %p98
        $region18: #{tpu_custom_call.1} parent=11 // pred_check_branch
          %202 = sbr.rel (%p200) target = $region20
        $region19: #{tpu_custom_call.1} parent=11 // pred_region
          _
        $region20: #{tpu_custom_call.1} parent=11 // pred_fallthru
          _
      $region12: #{tpu_custom_call.1} parent=5 // pred_fallthru
        _
      %p203 = scmp.lt.s32.totalorder %s18, 2
      // Predicated region
      $region21: #{tpu_custom_call.1} parent=5 // pred_check
        %p204 = pneg %p203
      $region22: #{tpu_custom_call.1} parent=5 // pred_check_branch
        %206 = sbr.rel (%p204) target = $region24
      $region23: #{tpu_custom_call.1} parent=5 // pred_region
        // Predicated region
        $region25: #{tpu_custom_call.1} parent=23 // pred_check
          %p207 = pneg %p50
        $region26: #{tpu_custom_call.1} parent=23 // pred_check_branch
          %209 = sbr.rel (%p207) target = $region28
        $region27: #{tpu_custom_call.1} parent=23 // pred_region
          %s210 = sand.u32 %s40, 1
          %s211 = scalar_lea.sflag [#allocation4], %s210
          %s212 = sand.u32 %s40, 1
          %s213 = smul.addr %s212, 8
          %s214 = scalar_lea.vmem [#allocation3], %s213
          %216 = vsyncadd %s211, 0
          %s217 = smul.addr %s25, 8
          %s218 = scalar_lea.hbm %s0, %s217
          %s220 = sshll.u32 %s218, 4
          %s221 = int_to_ptr.hbm [resolvable:$true] %s220
          %s222 = sshll.u32 %s214, 4
          %s223 = int_to_ptr.vmem [resolvable:$true] %s222
          %225 = dma.hbm_to_vmem [thread:$0]  %s221, 128, %s223, %s211
        $region28: #{tpu_custom_call.1} parent=23 // pred_fallthru
          _
      $region24: #{tpu_custom_call.1} parent=5 // pred_fallthru
        _
      %p226 = scmp.le.s32.totalorder 1, %s18
      %p227 = scmp.lt.s32.totalorder %s18, 3
      %p228 = pnand %p226, %p227
      %p229 = pneg %p228
      // Predicated region
      $region29: #{tpu_custom_call.1} parent=5 // pred_check
        _
      $region30: #{tpu_custom_call.1} parent=5 // pred_check_branch
        %231 = sbr.rel (%p228) target = $region32
      $region31: #{tpu_custom_call.1} parent=5 // pred_region
        %s232 = ssub.s32 %s18, 1
        %s233 = sand.u32 %s43, 1
        %s234 = scalar_lea.sflag [#allocation4], %s233
        %s235 = sand.u32 %s43, 1
        %s236 = smul.addr %s235, 8
        %s237 = scalar_lea.vmem [#allocation3], %s236
        // Predicated region
        $region33: #{tpu_custom_call.1} parent=31 // pred_check
          %p238 = pneg %p56
        $region34: #{tpu_custom_call.1} parent=31 // pred_check_branch
          %240 = sbr.rel (%p238) target = $region36
        $region35: #{tpu_custom_call.1} parent=31 // pred_region
          %242 = dma.done %s234, 128
        $region36: #{tpu_custom_call.1} parent=31 // pred_fallthru
          _
        %s243 = sand.u32 %s43, 1
        %s244 = scalar_lea.sflag [#allocation4], %s243
        %s245 = sand.u32 %s43, 1
        %s246 = smul.addr %s245, 8
        %s247 = scalar_lea.vmem [#allocation3], %s246
        %p248 = pneg %p56
        %p249 = pneg %p53
        %p250 = pneg %p77
        %p251 = pneg %p74
        %p252 = pneg %p98
        %p253 = pneg %p95
        %p254 = pneg %p126
        %p255 = pneg %p123
        %s256 = sand.u32 %s113, 1
        %s257 = scalar_lea.sflag [#allocation5], %s256
        %s258 = sand.u32 %s113, 1
        %s259 = smul.addr %s258, 8
        %s260 = scalar_lea.vmem [#allocation6], %s259
        %p261 = pneg %p154
        %p262 = pneg %p151
        %p263 = scmp.lt.s32.totalorder %s27, 1
        %s264 = scalar_select %p263, %s27, 1
        %p265 = scmp.lt.s32.totalorder %s28, 0
        %s266 = scalar_select %p265, %s28, 0
        %s267 = sadd.s32 %s266, %s264
        %s268 = smul.addr %s267, 8
        %s269 = scalar_lea.vmem %s4, %s268
        %p270 = pneg %p182
        %p271 = pneg %p179
        %p272 = scmp.lt.s32.totalorder %s27, 1
        %s273 = scalar_select %p272, %s27, 1
        %p274 = scmp.lt.s32.totalorder %s28, 0
        %s275 = scalar_select %p274, %s28, 0
        %s276 = sadd.s32 %s275, %s273
        %s277 = smul.addr %s276, 8
        %s278 = scalar_lea.vmem %s5, %s277
        %p279 = scmp.lt.s32.totalorder %s27, 1
        %s280 = scalar_select %p279, %s27, 1
        %p281 = scmp.lt.s32.totalorder %s28, 0
        %s282 = scalar_select %p281, %s28, 0
        %s283 = sadd.s32 %s282, %s280
        %s284 = smul.addr %s283, 8
        %s285 = scalar_lea.vmem %s4, %s284
        %p286 = scmp.lt.s32.totalorder %s27, 1
        %s287 = scalar_select %p286, %s27, 1
        %p288 = scmp.lt.s32.totalorder %s28, 0
        %s289 = scalar_select %p288, %s28, 0
        %s290 = sadd.s32 %s289, %s287
        %s291 = smul.addr %s290, 8
        %s292 = scalar_lea.vmem %s5, %s291
        %v293 = vld [vmem:[%s237] sm:$0xff]
        %vm294 = vcmask 130048
        %295 = vst.msk [vmem:[#allocation2] sm:$0xff] %vm294, %v293
        %v296 = vld [vmem:[%s237] sm:$0xff]
        %298 = vrot.lane.b32.xlu0 %v296, 127
        %v299 = vpop.permute.xlu0 %298
        %301 = vst.msk [vmem:[#allocation2 + $0x8] sm:$0xff] %vm294, %v299
        %v302 = vld [vmem:[%s237] sm:$0xff]
        %304 = vrot.lane.b32.xlu0 %v302, 126
        %v305 = vpop.permute.xlu0 %304
        %307 = vst.msk [vmem:[#allocation2 + $0x10] sm:$0xff] %vm294, %v305
        %v308 = vld [vmem:[%s1] sm:$0xff]
        %v309 = vld [vmem:[#allocation2] sm:$0xff]
        %v310 = vld [vmem:[#allocation2 + $0x8] sm:$0xff]
        %v311 = vld [vmem:[#allocation2 + $0x10] sm:$0xff]
        %v312 = vld [vmem:[%s2] sm:$0xff]
        %314 = vset.pattern.permute.xlu0 0
        %315 = vperm.xlu0 %314, %v312
        %v316 = vpop.permute.xlu0 %315
        %vm318 = vcmask 195584
        %v320 = vsel %vm318, %v308, 0
        %322 = vmatpush.msra.mxu0 0.0
        %323 = vmatpush.msra.mxu0 0.0
        %324 = vmatpush.msra.mxu0 0.0
        %325 = vmatpush.msra.mxu0 0.0
        %326 = vmatpush.msra.mxu0 0.0
        %327 = vmatpush.msra.mxu0 0.0
        %328 = vmatpush.msra.mxu0 0.0
        %329 = vmatpush.msra.mxu0 0.0
        %330 = vmatpush.msra.mxu0 0.0
        %331 = vmatpush.msra.mxu0 0.0
        %332 = vmatpush.msra.mxu0 0.0
        %333 = vmatpush.msra.mxu0 0.0
        %334 = vmatpush.msra.mxu0 0.0
        %335 = vmatpush.msra.mxu0 %v311
        %336 = vmatpush.msra.mxu0 %v310
        %337 = vmatpush.msra.mxu0 %v309
        %338 = vmatmul.f32.gmra.mxu0 %v320
        %v339 = vpop.f32.mrf.mxu0
        %v340 = vadd.f32 %v316, %v339
        %341 = vdwg.mxu0
        %v342 = vmax.f32 %v340, 0.0
        %343 = vst.msk [vmem:[%s260] sm:$0xff] %vm294, %v342
        %v344 = vsel %vm294, %v342, 0.0
        %345 = vadd.xlane.f32.xlu0 %v344
        %v346 = vpop.xlane.xlu0 %345
        %vm347 = vcmask 7168
        %348 = vst.msk [vmem:[%s285] sm:$0xff] %vm347, %v346
        %v349 = vmul.f32 %v342, %v342
        %v350 = vsel %vm294, %v349, 0.0
        %351 = vadd.xlane.f32.xlu0 %v350
        %v352 = vpop.xlane.xlu0 %351
        %353 = vst.msk [vmem:[%s292] sm:$0xff] %vm347, %v352
        %s354 = sand.u32 %s113, 1
        %s355 = scalar_lea.sflag [#allocation5], %s354
        %s356 = sand.u32 %s113, 1
        %s357 = smul.addr %s356, 8
        %s358 = scalar_lea.vmem [#allocation6], %s357
        %p359 = scmp.lt.s32.totalorder %s27, 1
        %s360 = scalar_select %p359, %s27, 1
        %p361 = scmp.lt.s32.totalorder %s28, 0
        %s362 = scalar_select %p361, %s28, 0
        %s363 = sadd.s32 %s362, %s360
        %s364 = smul.addr %s363, 8
        %s365 = scalar_lea.vmem %s4, %s364
        %p366 = scmp.lt.s32.totalorder %s27, 1
        %s367 = scalar_select %p366, %s27, 1
        %p368 = scmp.lt.s32.totalorder %s28, 0
        %s369 = scalar_select %p368, %s28, 0
        %s370 = sadd.s32 %s369, %s367
        %s371 = smul.addr %s370, 8
        %s372 = scalar_lea.vmem %s5, %s371
        // Predicated region
        $region37: #{tpu_custom_call.1} parent=31 // pred_check
          %p373 = pneg %p123
        $region38: #{tpu_custom_call.1} parent=31 // pred_check_branch
          %375 = sbr.rel (%p373) target = $region40
        $region39: #{tpu_custom_call.1} parent=31 // pred_region
          %377 = vsyncadd %s355, 0
          %s378 = sadd.s32 %s28, %s27
          %s379 = smul.addr %s378, 8
          %s380 = scalar_lea.hbm %s3, %s379
          %s382 = sshll.u32 %s358, 4
          %s383 = int_to_ptr.vmem [resolvable:$true] %s382
          %s384 = sshll.u32 %s380, 4
          %s385 = int_to_ptr.hbm [resolvable:$true] %s384
          %387 = dma.vmem_to_hbm [thread:$0]  %s383, 128, %s385, %s355
        $region40: #{tpu_custom_call.1} parent=31 // pred_fallthru
          _
        // Predicated region
        $region41: #{tpu_custom_call.1} parent=31 // pred_check
          %p388 = pneg %p151
        $region42: #{tpu_custom_call.1} parent=31 // pred_check_branch
          %390 = sbr.rel (%p388) target = $region44
        $region43: #{tpu_custom_call.1} parent=31 // pred_region
          _
        $region44: #{tpu_custom_call.1} parent=31 // pred_fallthru
          _
        // Predicated region
        $region45: #{tpu_custom_call.1} parent=31 // pred_check
          %p391 = pneg %p179
        $region46: #{tpu_custom_call.1} parent=31 // pred_check_branch
          %393 = sbr.rel (%p391) target = $region48
        $region47: #{tpu_custom_call.1} parent=31 // pred_region
          _
        $region48: #{tpu_custom_call.1} parent=31 // pred_fallthru
          _
      $region32: #{tpu_custom_call.1} parent=5 // pred_fallthru
        _
      %p394 = scmp.le.s32.totalorder 2, %s18
      // Predicated region
      $region49: #{tpu_custom_call.1} parent=5 // pred_check
        %p395 = pneg %p394
      $region50: #{tpu_custom_call.1} parent=5 // pred_check_branch
        %397 = sbr.rel (%p395) target = $region52
      $region51: #{tpu_custom_call.1} parent=5 // pred_region
        %s398 = ssub.s32 %s18, 2
        // Predicated region
        $region53: #{tpu_custom_call.1} parent=51 // pred_check
          %p399 = pneg %p129
        $region54: #{tpu_custom_call.1} parent=51 // pred_check_branch
          %401 = sbr.rel (%p399) target = $region56
        $region55: #{tpu_custom_call.1} parent=51 // pred_region
          %s402 = sand.u32 %s114, 1
          %s403 = scalar_lea.sflag [#allocation5], %s402
          %s404 = sand.u32 %s114, 1
          %s405 = smul.addr %s404, 8
          %s406 = scalar_lea.vmem [#allocation6], %s405
          %408 = dma.done %s403, 128
        $region56: #{tpu_custom_call.1} parent=51 // pred_fallthru
          _
        // Predicated region
        $region57: #{tpu_custom_call.1} parent=51 // pred_check
          %p409 = pneg %p157
        $region58: #{tpu_custom_call.1} parent=51 // pred_check_branch
          %411 = sbr.rel (%p409) target = $region60
        $region59: #{tpu_custom_call.1} parent=51 // pred_region
          %p412 = scmp.lt.s32.totalorder %s29, 1
          %s413 = scalar_select %p412, %s29, 1
          %p414 = scmp.lt.s32.totalorder %s30, 0
          %s415 = scalar_select %p414, %s30, 0
          %s416 = sadd.s32 %s415, %s413
          %s417 = smul.addr %s416, 8
          %s418 = scalar_lea.vmem %s4, %s417
        $region60: #{tpu_custom_call.1} parent=51 // pred_fallthru
          _
        // Predicated region
        $region61: #{tpu_custom_call.1} parent=51 // pred_check
          %p419 = pneg %p185
        $region62: #{tpu_custom_call.1} parent=51 // pred_check_branch
          %421 = sbr.rel (%p419) target = $region64
        $region63: #{tpu_custom_call.1} parent=51 // pred_region
          %p422 = scmp.lt.s32.totalorder %s29, 1
          %s423 = scalar_select %p422, %s29, 1
          %p424 = scmp.lt.s32.totalorder %s30, 0
          %s425 = scalar_select %p424, %s30, 0
          %s426 = sadd.s32 %s425, %s423
          %s427 = smul.addr %s426, 8
          %s428 = scalar_lea.vmem %s5, %s427
        $region64: #{tpu_custom_call.1} parent=51 // pred_fallthru
          _
      $region52: #{tpu_custom_call.1} parent=5 // pred_fallthru
        _
    $region6: #{tpu_custom_call.1} parent=1 // loop_footer
      %s22 = sadd.s32 1, %s18
    $region7: #{tpu_custom_call.1} parent=1 // loop_footer_branch
      %17 = sbr.rel target = $region3
    $region8: #{tpu_custom_call.1} parent=1 // loop_exit
      _
    %429 = vsyncpa [#allocation4], 1
    %s430 = scalar_lea.sflag [#allocation4], 1
    %431 = vsyncpa %s430, 1
    %432 = vsyncpa [#allocation5], 1
    %s433 = scalar_lea.sflag [#allocation5], 1
    %434 = vsyncpa %s433, 1

</llo_original>
